<compile_context>
chip_gen: v7x
topology: tpu7x:2x2x1
jax: 0.10.0
libtpu: 0.0.40
codegen_flags: <defaults>
</compile_context>

<pallas_src>
import functools

import jax
import jax.numpy as jnp
from jax.experimental import pallas as pl
from jax.experimental.pallas import tpu as pltpu


def edge_enhancer_kernel(W, x_ref, w_ref, b_ref, m_ref, o_ref):
    """One grid step: a (Rb, HWp) slab of rows, Rb = G images * C channels.

    W      : image width (static Python int) -- needed for the vertical rolls.
    x_ref  : (Rb, HWp) input rows, lane-dense (padded H*W on the lane axis).
    w_ref  : (Rb, Rb)  block-diagonal kron(I_G, W_eff) conv+BN weight (resident).
    b_ref  : (Rb, 1)   folded BN bias, kept in f32 (resident).
    m_ref  : (4, HWp)  packed border masks: rows = [left, right, up, down] valid.
    o_ref  : (Rb, HWp) output rows.
    """
    x = x_ref[...]
    HWp = x.shape[-1]

    m = m_ref[...]
    ml = m[0:1, :]   # neighbor (i, j-1) is valid
    mr = m[1:2, :]   # neighbor (i, j+1) is valid
    mu = m[2:3, :]   # neighbor (i-1, j) is valid
    md = m[3:4, :]   # neighbor (i+1, j) is valid

    # ---- 3x3 average pool, stride 1, pad 1, count_include_pad=True (/9) ----
    # Neighbors are lane rolls of the flattened (padded) H*W axis; the masks
    # zero out wrapped-around / out-of-image elements.  Rolls act per-row of
    # the slab, so images/channels never contaminate each other.
    hsum = (x
            + ml * pltpu.roll(x, shift=1, axis=1)           # x[.., i, j-1]
            + mr * pltpu.roll(x, shift=HWp - 1, axis=1))     # x[.., i, j+1]
    vsum = (hsum
            + mu * pltpu.roll(hsum, shift=W, axis=1)         # row i-1
            + md * pltpu.roll(hsum, shift=HWp - W, axis=1))  # row i+1
    edge = x - vsum * (1.0 / 9.0)

    # ---- 1x1 conv (+ folded BatchNorm) as one MXU matmul, then sigmoid ----
    y = jnp.dot(w_ref[...], edge, preferred_element_type=jnp.float32)
    y = y + b_ref[...]                              # f32 bias, f32 accumulate
    o_ref[...] = x + jax.nn.sigmoid(y).astype(x.dtype)


def _choose_images_per_block(N, C, HW_pad, itemsize, max_rows=128, target_bytes=4 << 20):
    """Pick G = whole images per grid step.

    Priority order:
      1. Legality: G divides N, and G*C is a multiple of 8 (sublane tiling)
         or the block covers every row (G == N).
      2. Cap Rb = G*C at `max_rows` (one MXU tile): the resident
         kron(I_G, W_eff) weight costs Rb^2 bytes / MACs, so growing Rb past
         a single MXU tile is pure waste -- grow work via more grid steps.
      3. Prefer >= 2 grid steps whenever N permits (2 TensorCores on v7x;
         costs nothing on single-TC v5e/v6e).
      4. Within that, the largest block under `target_bytes` to amortize the
         ~0.35us/step pipeline overhead.
    """
    divisors = [g for g in range(1, N + 1) if N % g == 0]
    legal = [g for g in divisors if (g * C) % 8 == 0 or g == N]
    if not legal:
        legal = [N]
    capped = [g for g in legal if g * C <= max_rows]
    if not capped:
        capped = [min(legal, key=lambda g: g * C)]

    def fits(g):
        return g * C * HW_pad * itemsize <= target_bytes

    two_step = [g for g in capped if (N // g) >= 2 and fits(g)]
    if two_step:
        return max(two_step)
    fitting = [g for g in capped if fits(g)]
    if fitting:
        return max(fitting)
    return min(capped)


def edge_enhancer(x, w_eff, b_eff):
    """x: (N, C, H, W); w_eff: (C, C) BN-folded 1x1 conv weight; b_eff: (C,) bias."""
    N, C, H, W = x.shape
    HW = H * W
    HW_pad = pl.cdiv(HW, 128) * 128          # lane-dense: pad H*W to a 128 multiple
    R = N * C
    dt = x.dtype
    itemsize = jnp.dtype(dt).itemsize

    G = _choose_images_per_block(N, C, HW_pad, itemsize)
    Rb = G * C
    steps = N // G

    # Lane-dense view (free reshape) + zero lane-padding if needed.
    x2d = x.reshape(R, HW)
    if HW_pad != HW:
        x2d = jnp.pad(x2d, ((0, 0), (0, HW_pad - HW)))

    # Resident operands.
    w_bd = jnp.kron(jnp.eye(G, dtype=w_eff.dtype), w_eff).astype(dt)        # (Rb, Rb)
    b_bd = jnp.tile(jnp.reshape(b_eff, (C, 1)), (G, 1)).astype(jnp.float32)  # (Rb, 1) f32

    # Packed border masks (valid-neighbor indicators), zero in the lane padding.
    idx = jnp.arange(HW_pad, dtype=jnp.int32)
    col = idx % W
    row = idx // W
    valid = idx < HW
    ml = ((col > 0) & valid).astype(dt)
    mr = ((col < W - 1) & valid).astype(dt)
    mu = ((row > 0) & valid).astype(dt)
    md = ((row < H - 1) & valid).astype(dt)
    masks = jnp.stack([ml, mr, mu, md], axis=0)                              # (4, HW_pad)

    # VMEM budget from the actual live set.
    x_block = Rb * HW_pad * itemsize
    w_bytes = Rb * Rb * itemsize
    b_bytes = ((Rb + 7) // 8) * 8 * 128 * 4          # (Rb,1) f32 pads to 128 lanes
    m_bytes = 8 * HW_pad * itemsize                  # (4,HWp) pads to 8 sublanes
    live = 2 * x_block                               # double-buffered x blocks
    live += 2 * x_block                              # double-buffered out blocks
    live += 2 * (w_bytes + b_bytes + m_bytes)        # resident operands (default 2 bufs)
    temps = 6 * Rb * HW_pad * 4                      # in-kernel f32 temporaries
    vmem_limit = int(max(16 << 20, min(48 << 20, live + temps + (2 << 20))))

    out2d = pl.pallas_call(
        functools.partial(edge_enhancer_kernel, W),
        out_shape=jax.ShapeDtypeStruct((R, HW_pad), dt),
        grid_spec=pltpu.PrefetchScalarGridSpec(
            num_scalar_prefetch=0,
            grid=(steps,),
            in_specs=[
                pl.BlockSpec((Rb, HW_pad), lambda g: (g, 0)),   # x rows (G whole images)
                pl.BlockSpec((Rb, Rb), lambda g: (0, 0)),       # block-diag weight (resident)
                pl.BlockSpec((Rb, 1), lambda g: (0, 0)),        # f32 bias (resident)
                pl.BlockSpec((4, HW_pad), lambda g: (0, 0)),    # packed masks (resident)
            ],
            out_specs=pl.BlockSpec((Rb, HW_pad), lambda g: (g, 0)),
        ),
        compiler_params=pltpu.CompilerParams(
            dimension_semantics=("parallel",),
            vmem_limit_bytes=vmem_limit,
        ),
    )(x2d, w_bd, b_bd, masks)

    if HW_pad != HW:
        out2d = out2d[:, :HW]
    return out2d.reshape(N, C, H, W)


def reference_edge_enhancer(x, w_eff, b_eff):
    """Pure-JAX reference (mirrors the PyTorch module with BN folded, eval mode)."""
    N, C, H, W = x.shape
    xp = jnp.pad(x, ((0, 0), (0, 0), (1, 1), (1, 1)))
    pool = jnp.zeros_like(x)
    for di in range(3):
        for dj in range(3):
            pool = pool + xp[:, :, di:di + H, dj:dj + W]
    pool = pool / 9.0
    edge = x - pool
    y = jnp.einsum("oc,nchw->nohw", w_eff, edge) + jnp.reshape(b_eff, (1, C, 1, 1))
    return x + jax.nn.sigmoid(y)


if __name__ == "__main__":
    key = jax.random.PRNGKey(0)
    k_x, k_w, k_g, k_b, k_m, k_v = jax.random.split(key, 6)

    N, C, H, W = 2, 4, 16, 16
    x = jax.random.normal(k_x, (N, C, H, W), dtype=jnp.float32)

    # Conv2d(C, C, 1, bias=False) weight: (C, C, 1, 1) -> (C, C)
    conv_w = jax.random.normal(k_w, (C, C), dtype=jnp.float32) * 0.5

    # BatchNorm2d(C) parameters (eval mode), deterministic init.
    gamma = 1.0 + 0.1 * jax.random.normal(k_g, (C,), dtype=jnp.float32)
    beta = 0.1 * jax.random.normal(k_b, (C,), dtype=jnp.float32)
    running_mean = 0.1 * jax.random.normal(k_m, (C,), dtype=jnp.float32)
    running_var = 1.0 + 0.1 * jax.random.uniform(k_v, (C,), dtype=jnp.float32)
    eps = 1e-5

    # Fold BN into the 1x1 conv: y = scale * (W @ e) + (beta - scale * mean)
    scale = gamma / jnp.sqrt(running_var + eps)
    w_eff = scale[:, None] * conv_w          # (C, C)
    b_eff = beta - scale * running_mean      # (C,)

    out = edge_enhancer(x, w_eff, b_eff)
    out = jax.block_until_ready(out)

    ref = reference_edge_enhancer(x, w_eff, b_eff)
    assert out.shape == (N, C, H, W)
    assert jnp.allclose(out, ref, atol=1e-5, rtol=1e-5), "mismatch vs reference"

    print("KERNEL_OK")
</pallas_src>

<mosaic_0001>
module attributes {stable_mosaic.version = 11 : i64} {
  func.func @edge_enhancer_kernel(%arg0: i32, %arg1: memref<8x256xf32, #tpu.memory_space<vmem>>, %arg2: memref<8x8xf32, #tpu.memory_space<vmem>>, %arg3: memref<8x1xf32, #tpu.memory_space<vmem>>, %arg4: memref<4x256xf32, #tpu.memory_space<vmem>>, %arg5: memref<8x256xf32, #tpu.memory_space<vmem>>) attributes {dimension_semantics = [#tpu.dimension_semantics<parallel>], iteration_bounds = array<i64: 1>, scalar_prefetch = 0 : i64, scratch_operands = 0 : i64, tpu.core_type = #tpu.core_type<tc>, window_params = [{transform_indices = @transform_0, window_bounds = array<i64: 8, 256>}, {pipeline_mode = #tpu.pipeline_mode<synchronous>, transform_indices = @transform_1, window_bounds = array<i64: 8, 8>}, {pipeline_mode = #tpu.pipeline_mode<synchronous>, transform_indices = @transform_2, window_bounds = array<i64: 8, 1>}, {pipeline_mode = #tpu.pipeline_mode<synchronous>, transform_indices = @transform_3, window_bounds = array<i64: 4, 256>}, {transform_indices = @transform_4, window_bounds = array<i64: 8, 256>}]} {
    %c0 = arith.constant 0 : index
    %c0_0 = arith.constant 0 : index
    %0 = vector.load %arg1[%c0, %c0_0] : memref<8x256xf32, #tpu.memory_space<vmem>>, vector<8x256xf32>
    %c0_1 = arith.constant 0 : index
    %c0_2 = arith.constant 0 : index
    %1 = vector.load %arg4[%c0_1, %c0_2] : memref<4x256xf32, #tpu.memory_space<vmem>>, vector<4x256xf32>
    %2 = vector.extract_strided_slice %1 {offsets = [0, 0], sizes = [1, 256], strides = [1, 1]} : vector<4x256xf32> to vector<1x256xf32>
    %3 = vector.extract_strided_slice %1 {offsets = [1, 0], sizes = [1, 256], strides = [1, 1]} : vector<4x256xf32> to vector<1x256xf32>
    %4 = vector.extract_strided_slice %1 {offsets = [2, 0], sizes = [1, 256], strides = [1, 1]} : vector<4x256xf32> to vector<1x256xf32>
    %5 = vector.extract_strided_slice %1 {offsets = [3, 0], sizes = [1, 256], strides = [1, 1]} : vector<4x256xf32> to vector<1x256xf32>
    %c1_i32 = arith.constant 1 : i32
    %6 = tpu.dynamic_rotate %0 by %c1_i32 dim 1 : vector<8x256xf32>, i32 -> vector<8x256xf32>
    %7 = vector.broadcast %2 : vector<1x256xf32> to vector<8x256xf32>
    %8 = arith.mulf %7, %6 : vector<8x256xf32>
    %9 = arith.addf %0, %8 : vector<8x256xf32>
    %c255_i32 = arith.constant 255 : i32
    %10 = tpu.dynamic_rotate %0 by %c255_i32 dim 1 : vector<8x256xf32>, i32 -> vector<8x256xf32>
    %11 = vector.broadcast %3 : vector<1x256xf32> to vector<8x256xf32>
    %12 = arith.mulf %11, %10 : vector<8x256xf32>
    %13 = arith.addf %9, %12 : vector<8x256xf32>
    %c16_i32 = arith.constant 16 : i32
    %14 = tpu.dynamic_rotate %13 by %c16_i32 dim 1 : vector<8x256xf32>, i32 -> vector<8x256xf32>
    %15 = vector.broadcast %4 : vector<1x256xf32> to vector<8x256xf32>
    %16 = arith.mulf %15, %14 : vector<8x256xf32>
    %17 = arith.addf %13, %16 : vector<8x256xf32>
    %c240_i32 = arith.constant 240 : i32
    %18 = tpu.dynamic_rotate %13 by %c240_i32 dim 1 : vector<8x256xf32>, i32 -> vector<8x256xf32>
    %19 = vector.broadcast %5 : vector<1x256xf32> to vector<8x256xf32>
    %20 = arith.mulf %19, %18 : vector<8x256xf32>
    %21 = arith.addf %17, %20 : vector<8x256xf32>
    %cst = arith.constant 0.111111112 : f32
    %22 = vector.broadcast %cst : f32 to vector<8x256xf32>
    %23 = arith.mulf %21, %22 : vector<8x256xf32>
    %24 = arith.subf %0, %23 : vector<8x256xf32>
    %c0_3 = arith.constant 0 : index
    %c0_4 = arith.constant 0 : index
    %25 = vector.load %arg2[%c0_3, %c0_4] : memref<8x8xf32, #tpu.memory_space<vmem>>, vector<8x8xf32>
    %cst_5 = arith.constant dense<0.000000e+00> : vector<8x256xf32>
    %26 = tpu.matmul %25, %24, %cst_5 {dimension_numbers = #tpu.dot_dimension_numbers<[1], [0], [0], [1], [0, 0, 1, 1], [], []>} : vector<8x8xf32>, vector<8x256xf32>, vector<8x256xf32> -> vector<8x256xf32>
    %c0_6 = arith.constant 0 : index
    %c0_7 = arith.constant 0 : index
    %27 = vector.load %arg3[%c0_6, %c0_7] : memref<8x1xf32, #tpu.memory_space<vmem>>, vector<8x1xf32>
    %28 = vector.broadcast %27 : vector<8x1xf32> to vector<8x256xf32>
    %29 = arith.addf %26, %28 : vector<8x256xf32>
    %30 = arith.negf %29 : vector<8x256xf32>
    %31 = math.exp %30 : vector<8x256xf32>
    %cst_8 = arith.constant 1.000000e+00 : f32
    %32 = vector.broadcast %cst_8 : f32 to vector<8x256xf32>
    %33 = arith.addf %32, %31 : vector<8x256xf32>
    %34 = arith.divf %32, %33 : vector<8x256xf32>
    %35 = arith.addf %0, %34 : vector<8x256xf32>
    %c0_9 = arith.constant 0 : index
    %c0_10 = arith.constant 0 : index
    %36 = vector.load %arg5[%c0_9, %c0_10] : memref<8x256xf32, #tpu.memory_space<vmem>>, vector<8x256xf32>
    tpu.vector_store %arg5[%c0_9, %c0_10], %35 {strides = array<i32>} : memref<8x256xf32, #tpu.memory_space<vmem>>, vector<8x256xf32>,
    return
  }
  func.func @transform_0(%arg0: i32) -> (i32, i32) {
    %c0_i32 = arith.constant 0 : i32
    %c0_i32_0 = arith.constant 0 : i32
    return %arg0, %c0_i32 : i32, i32
  }
  func.func @transform_1(%arg0: i32) -> (i32, i32) {
    %c0_i32 = arith.constant 0 : i32
    %c0_i32_0 = arith.constant 0 : i32
    %c0_i32_1 = arith.constant 0 : i32
    return %c0_i32, %c0_i32_0 : i32, i32
  }
  func.func @transform_2(%arg0: i32) -> (i32, i32) {
    %c0_i32 = arith.constant 0 : i32
    %c0_i32_0 = arith.constant 0 : i32
    %c0_i32_1 = arith.constant 0 : i32
    return %c0_i32, %c0_i32_0 : i32, i32
  }
  func.func @transform_3(%arg0: i32) -> (i32, i32) {
    %c0_i32 = arith.constant 0 : i32
    %c0_i32_0 = arith.constant 0 : i32
    %c0_i32_1 = arith.constant 0 : i32
    return %c0_i32, %c0_i32_0 : i32, i32
  }
  func.func @transform_4(%arg0: i32) -> (i32, i32) {
    %c0_i32 = arith.constant 0 : i32
    %c0_i32_0 = arith.constant 0 : i32
    return %arg0, %c0_i32 : i32, i32
  }
}

</mosaic_0001>

<llo_original>
// kernel: tpu_custom_call.1
$region0: #{tpu_custom_call.1}
  #allocation0 [shape = 'u32[]', space=smem, size = 0x4, offset = 0x4, fixed_abs, tag = 'smem constant byte address 0x4 - core index']
  #allocation1 [shape = 'u32[144,128]{1,0:T(1,128)}', space=vmem, size = 0x12000, scoped, tag = 'internal scratch']
  %s0 = inlined_call_operand.hbm [shape: f32[8,256], index: 0, kind: input, shape index: {}]
  %s1 = inlined_call_operand.vmem [shape: f32[8,8], index: 1, kind: input, shape index: {}]
  %s2 = inlined_call_operand.vmem [shape: f32[8,1], index: 2, kind: input, shape index: {}]
  %s3 = inlined_call_operand.vmem [shape: f32[4,256], index: 3, kind: input, shape index: {}]
  %s4 = inlined_call_operand.hbm [shape: f32[8,256], index: 4, kind: output, shape index: {}]
  %s5 = sld [smem:[#allocation0]]
  $region30: #{tpu_custom_call.1} parent=0
    _
  %s7 = ssub.s32 1, %s5
  %s8 = scalar_select 0, %s7, %s5
  $region1: #{tpu_custom_call.1} parent=0
    #allocation2 [shape = 'u8[8192]{0}', space=vmem, size = 0x2000, scoped, tag = 'input window, operand 0, single buffered']
    #allocation3 [shape = 's32[1]{0}', space=sflag, size = 0x4, scoped, tag = 'scoped memory for tpu_custom_call.1']
    #allocation4 [shape = 's32[1]{0}', space=sflag, size = 0x4, scoped, tag = 'scoped memory for tpu_custom_call.1']
    #allocation5 [shape = 'u8[8192]{0}', space=vmem, size = 0x2000, scoped, tag = 'output window, operand 0, single buffered']
    %9 = vsyncpa [#allocation3], 0
    %10 = vsyncpa [#allocation4], 0
    // Predicated region
    $region2: #{tpu_custom_call.1} parent=1 // pred_check
      _
    $region3: #{tpu_custom_call.1} parent=1 // pred_check_branch
      %12 = sbr.rel (0) target = $region5
    $region4: #{tpu_custom_call.1} parent=1 // pred_region
      %s14 = ssub.s32 256, 256
      %15 = vsyncadd [#allocation3], %s14
      %s17 = sshll.u32 [#allocation2], 4
      %s18 = int_to_ptr.vmem [resolvable:$true] %s17
      %20 = dma.hbm_to_vmem [thread:$0]  %s0, 256, %s18, [#allocation3]
    $region5: #{tpu_custom_call.1} parent=1 // pred_fallthru
      _
    // Predicated region
    $region6: #{tpu_custom_call.1} parent=1 // pred_check
      _
    $region7: #{tpu_custom_call.1} parent=1 // pred_check_branch
      %22 = sbr.rel (0) target = $region9
    $region8: #{tpu_custom_call.1} parent=1 // pred_region
      _
    $region9: #{tpu_custom_call.1} parent=1 // pred_fallthru
      _
    // Predicated region
    $region10: #{tpu_custom_call.1} parent=1 // pred_check
      _
    $region11: #{tpu_custom_call.1} parent=1 // pred_check_branch
      %24 = sbr.rel (0) target = $region13
    $region12: #{tpu_custom_call.1} parent=1 // pred_region
      _
    $region13: #{tpu_custom_call.1} parent=1 // pred_fallthru
      _
    // Predicated region
    $region14: #{tpu_custom_call.1} parent=1 // pred_check
      _
    $region15: #{tpu_custom_call.1} parent=1 // pred_check_branch
      %26 = sbr.rel (0) target = $region17
    $region16: #{tpu_custom_call.1} parent=1 // pred_region
      _
    $region17: #{tpu_custom_call.1} parent=1 // pred_fallthru
      _
    // Predicated region
    $region18: #{tpu_custom_call.1} parent=1 // pred_check
      _
    $region19: #{tpu_custom_call.1} parent=1 // pred_check_branch
      %28 = sbr.rel (0) target = $region21
    $region20: #{tpu_custom_call.1} parent=1 // pred_region
      %29 = dma.done [#allocation3], 256
    $region21: #{tpu_custom_call.1} parent=1 // pred_fallthru
      _
    %v30 = vld [vmem:[#allocation2] sm:$0xff]
    %v31 = vld [vmem:[#allocation2 + $0x8] sm:$0xff]
    %v32 = vld [vmem:[%s3] sm:$0xff]
    %33 = vrot.lane.b32.xlu0 %v30, 1
    %v34 = vpop.permute.xlu0 %33
    %35 = vrot.lane.b32.xlu0 %v31, 1
    %v36 = vpop.permute.xlu0 %35
    %v37 = vlaneseq
    %v38 = vand.u32 %v37, 127
    %vm39 = vcmp.lt.s32.totalorder %v38, 1
    %v40 = vsel %vm39, %v34, %v36
    %v41 = vsel %vm39, %v36, %v34
    %v43 = vlaneseq
    %v44 = vshrl.u32 %v43, 7
    %v45 = vsub.s32 0, %v44
    %v46 = vrot.slane %v32, %v45
    %v47 = vlaneseq
    %v48 = vshrl.u32 %v47, 7
    %v49 = vsub.s32 4, %v48
    %v50 = vrot.slane %v32, %v49
    %v53 = vlaneseq
    %v54 = vshrl.u32 %v53, 7
    %v55 = vsub.s32 0, %v54
    %v56 = vrot.slane %v46, %v55
    %v57 = vlaneseq
    %v58 = vshrl.u32 %v57, 7
    %v59 = vsub.s32 0, %v58
    %v60 = vrot.slane %v50, %v59
    %v61 = vmul.f32 %v56, %v41
    %v62 = vmul.f32 %v60, %v40
    %v63 = vadd.f32 %v30, %v61
    %v64 = vadd.f32 %v31, %v62
    %65 = vrot.lane.b32.xlu0 %v30, 127
    %v66 = vpop.permute.xlu0 %65
    %67 = vrot.lane.b32.xlu0 %v31, 127
    %v68 = vpop.permute.xlu0 %67
    %vm69 = vcmp.lt.s32.totalorder %v38, 127
    %v70 = vsel %vm69, %v66, %v68
    %v71 = vsel %vm69, %v68, %v66
    %v72 = vlaneseq
    %v73 = vshrl.u32 %v72, 7
    %v74 = vsub.s32 1, %v73
    %v75 = vrot.slane %v32, %v74
    %v76 = vlaneseq
    %v77 = vshrl.u32 %v76, 7
    %v78 = vsub.s32 5, %v77
    %v79 = vrot.slane %v32, %v78
    %v82 = vlaneseq
    %v83 = vshrl.u32 %v82, 7
    %v84 = vsub.s32 1, %v83
    %v85 = vrot.slane %v75, %v84
    %v86 = vlaneseq
    %v87 = vshrl.u32 %v86, 7
    %v88 = vsub.s32 1, %v87
    %v89 = vrot.slane %v79, %v88
    %v90 = vmul.f32 %v85, %v70
    %v91 = vmul.f32 %v89, %v71
    %v92 = vadd.f32 %v63, %v90
    %v93 = vadd.f32 %v64, %v91
    %94 = vrot.lane.b32.xlu0 %v92, 16
    %v95 = vpop.permute.xlu0 %94
    %96 = vrot.lane.b32.xlu0 %v93, 16
    %v97 = vpop.permute.xlu0 %96
    %vm98 = vcmp.lt.s32.totalorder %v38, 16
    %v99 = vsel %vm98, %v95, %v97
    %v100 = vsel %vm98, %v97, %v95
    %v101 = vlaneseq
    %v102 = vshrl.u32 %v101, 7
    %v103 = vsub.s32 2, %v102
    %v104 = vrot.slane %v32, %v103
    %v105 = vlaneseq
    %v106 = vshrl.u32 %v105, 7
    %v107 = vsub.s32 6, %v106
    %v108 = vrot.slane %v32, %v107
    %v111 = vlaneseq
    %v112 = vshrl.u32 %v111, 7
    %v113 = vsub.s32 2, %v112
    %v114 = vrot.slane %v104, %v113
    %v115 = vlaneseq
    %v116 = vshrl.u32 %v115, 7
    %v117 = vsub.s32 2, %v116
    %v118 = vrot.slane %v108, %v117
    %v119 = vmul.f32 %v114, %v100
    %v120 = vmul.f32 %v118, %v99
    %v121 = vadd.f32 %v92, %v119
    %v122 = vadd.f32 %v93, %v120
    %123 = vrot.lane.b32.xlu0 %v92, 112
    %v124 = vpop.permute.xlu0 %123
    %125 = vrot.lane.b32.xlu0 %v93, 112
    %v126 = vpop.permute.xlu0 %125
    %vm127 = vcmp.lt.s32.totalorder %v38, 112
    %v128 = vsel %vm127, %v124, %v126
    %v129 = vsel %vm127, %v126, %v124
    %v130 = vlaneseq
    %v131 = vshrl.u32 %v130, 7
    %v132 = vsub.s32 3, %v131
    %v133 = vrot.slane %v32, %v132
    %v134 = vlaneseq
    %v135 = vshrl.u32 %v134, 7
    %v136 = vsub.s32 7, %v135
    %v137 = vrot.slane %v32, %v136
    %v140 = vlaneseq
    %v141 = vshrl.u32 %v140, 7
    %v142 = vsub.s32 3, %v141
    %v143 = vrot.slane %v133, %v142
    %v144 = vlaneseq
    %v145 = vshrl.u32 %v144, 7
    %v146 = vsub.s32 3, %v145
    %v147 = vrot.slane %v137, %v146
    %v148 = vmul.f32 %v143, %v128
    %v149 = vmul.f32 %v147, %v129
    %v150 = vadd.f32 %v121, %v148
    %v151 = vadd.f32 %v122, %v149
    %v152 = vmul.f32 %v150, 0.11111111
    %v153 = vmul.f32 %v151, 0.11111111
    %v154 = vsub.f32 %v30, %v152
    %v155 = vsub.f32 %v31, %v153
    %v156 = vld [vmem:[%s1] sm:$0xff]
    %v157 = vld [vmem:[%s2] sm:$0xff]
    %159 = vset.pattern.permute.xlu0 0
    %160 = vperm.xlu0 %159, %v157
    %v161 = vpop.permute.xlu0 %160
    %vm163 = vcmask 64512
    %v165 = vsel %vm163, %v156, 0
    %167 = vmatprep.subr.mxu0 %v155
    %168 = vmatpush1.msra.mxu0 %v154
    %169 = vmatprep.subr.mxu0 0.0
    %170 = vmatpush1.msra.mxu0 0.0
    %171 = vmatprep.subr.mxu0 0.0
    %172 = vmatpush1.msra.mxu0 0.0
    %173 = vmatprep.subr.mxu0 0.0
    %174 = vmatpush1.msra.mxu0 0.0
    %175 = vmatprep.subr.mxu0 0.0
    %176 = vmatpush1.msra.mxu0 0.0
    %177 = vmatprep.subr.mxu0 0.0
    %178 = vmatpush1.msra.mxu0 0.0
    %179 = vmatprep.subr.mxu0 0.0
    %180 = vmatpush1.msra.mxu0 0.0
    %181 = vmatprep.subr.mxu0 0.0
    %182 = vmatpush1.msra.mxu0 0.0
    %183 = vmatprep.subr.mxu0 0.0
    %184 = vmatpush1.msra.mxu0 0.0
    %185 = vmatprep.subr.mxu0 0.0
    %186 = vmatpush1.msra.mxu0 0.0
    %187 = vmatprep.subr.mxu0 0.0
    %188 = vmatpush1.msra.mxu0 0.0
    %189 = vmatprep.subr.mxu0 0.0
    %190 = vmatpush1.msra.mxu0 0.0
    %191 = vmatprep.subr.mxu0 0.0
    %192 = vmatpush1.msra.mxu0 0.0
    %193 = vmatprep.subr.mxu0 0.0
    %194 = vmatpush1.msra.mxu0 0.0
    %195 = vmatprep.subr.mxu0 0.0
    %196 = vmatpush1.msra.mxu0 0.0
    %197 = vmatprep.subr.mxu0 0.0
    %198 = vmatpush1.msra.mxu0 0.0
    %199 = vmatprep.subr.mxu0 0.0
    %200 = vmatpush1.msra.mxu0 0.0
    %201 = vmatprep.subr.mxu0 0.0
    %202 = vmatpush1.msra.mxu0 0.0
    %203 = vmatprep.subr.mxu0 0.0
    %204 = vmatpush1.msra.mxu0 0.0
    %205 = vmatprep.subr.mxu0 0.0
    %206 = vmatpush1.msra.mxu0 0.0
    %207 = vmatprep.subr.mxu0 0.0
    %208 = vmatpush1.msra.mxu0 0.0
    %209 = vmatprep.subr.mxu0 0.0
    %210 = vmatpush1.msra.mxu0 0.0
    %211 = vmatprep.subr.mxu0 0.0
    %212 = vmatpush1.msra.mxu0 0.0
    %213 = vmatprep.subr.mxu0 0.0
    %214 = vmatpush1.msra.mxu0 0.0
    %215 = vmatprep.subr.mxu0 0.0
    %216 = vmatpush1.msra.mxu0 0.0
    %217 = vmatprep.subr.mxu0 0.0
    %218 = vmatpush1.msra.mxu0 0.0
    %219 = vmatprep.subr.mxu0 0.0
    %220 = vmatpush1.msra.mxu0 0.0
    %221 = vmatprep.subr.mxu0 0.0
    %222 = vmatpush1.msra.mxu0 0.0
    %223 = vmatprep.subr.mxu0 0.0
    %224 = vmatpush1.msra.mxu0 0.0
    %225 = vmatprep.subr.mxu0 0.0
    %226 = vmatpush1.msra.mxu0 0.0
    %227 = vmatprep.subr.mxu0 0.0
    %228 = vmatpush1.msra.mxu0 0.0
    %229 = vmatprep.subr.mxu0 0.0
    %230 = vmatpush1.msra.mxu0 0.0
    %231 = vmatprep.mubr.f32.mxu0 0.0
    %232 = vmatmul.mubr.f32.gmra.mrb[0].mxu0 %v165
    %v233 = vpop.f32.mrb[0].mxu0
    %v234 = vadd.f32 %v161, %v233
    %v235 = vpop.f32.mrb[0].mxu0
    %v236 = vadd.f32 %v161, %v235
    %237 = vdwg.mxu0
    %v238 = vxor.u32 %v234, 2147483648
    %v239 = vxor.u32 %v236, 2147483648
    %v240 = vmul.f32 %v238, 1.442695
    %v241 = vpow.pop %v240
    %v242 = vmul.f32 %v239, 1.442695
    %v243 = vpow.pop %v242
    %v244 = vadd.f32 %v241, 1.0
    %v245 = vadd.f32 %v243, 1.0
    %v246 = vrcp.pop %v244
    %v247 = vmul.f32 1.0, %v246
    %v248 = vrcp.pop %v245
    %v249 = vmul.f32 1.0, %v248
    %v250 = vadd.f32 %v30, %v247
    %v251 = vadd.f32 %v31, %v249
    %252 = vst [vmem:[#allocation5] sm:$0xff] %v250
    %253 = vst [vmem:[#allocation5 + $0x8] sm:$0xff] %v251
    // Predicated region
    $region22: #{tpu_custom_call.1} parent=1 // pred_check
      _
    $region23: #{tpu_custom_call.1} parent=1 // pred_check_branch
      %255 = sbr.rel (0) target = $region25
    $region24: #{tpu_custom_call.1} parent=1 // pred_region
      %s257 = ssub.s32 256, 256
      %258 = vsyncadd [#allocation4], %s257
      %s260 = sshll.u32 [#allocation5], 4
      %s261 = int_to_ptr.vmem [resolvable:$true] %s260
      %263 = dma.vmem_to_hbm [thread:$0]  %s261, 256, %s4, [#allocation4]
    $region25: #{tpu_custom_call.1} parent=1 // pred_fallthru
      _
    // Predicated region
    $region26: #{tpu_custom_call.1} parent=1 // pred_check
      _
    $region27: #{tpu_custom_call.1} parent=1 // pred_check_branch
      %265 = sbr.rel (0) target = $region29
    $region28: #{tpu_custom_call.1} parent=1 // pred_region
      %266 = dma.done [#allocation4], 256
    $region29: #{tpu_custom_call.1} parent=1 // pred_fallthru
      _
    %267 = vsyncpa [#allocation3], 1
    %268 = vsyncpa [#allocation4], 1

</llo_original>
